<compile_context>
chip_gen: v7x
topology: tpu7x:2x2x1
jax: 0.10.0
libtpu: 0.0.40
codegen_flags: <defaults>
</compile_context>

<pallas_src>
import jax
import jax.numpy as jnp
from jax.experimental import pallas as pl
from jax.experimental.pallas import tpu as pltpu

NUM_CLASSES = 28
THRESHOLD = 0.5          # realized as a sign test on the raw logits inside the kernel

_NUM_SPLITS = 2          # leading "parallel" axis -> 2 TensorCores on v7x; serial elsewhere
_ACC_ROWS = 8            # MXU result rows (all identical column sums; row 0 is consumed)


def _round_up(x, m):
    return ((x + m - 1) // m) * m


def _f1_partials_kernel(labels_ref, logits_ref, tp_ref, sp_ref, st_ref):
    j = pl.program_id(1)                      # reduction step within this split

    @pl.when(j == 0)
    def _init():
        tp_ref[...] = jnp.zeros_like(tp_ref)
        sp_ref[...] = jnp.zeros_like(sp_ref)
        st_ref[...] = jnp.zeros_like(st_ref)

    labels = labels_ref[...]                  # (TB, L) int32, values in [0, NUM_CLASSES]
    logits = logits_ref[...]                  # (TB, C) float32
    TB, L = labels.shape
    C = logits.shape[1]                       # C == NUM_CLASSES

    # k-hot target as an int32 bitmask: bit c of mask[b] <=> class c present in row b.
    # OR handles duplicated labels (PyTorch's sum+clamp); the padding class sets bit 28,
    # which is never extracted below -> reproduces y_true[:, :-1].
    bits = jnp.left_shift(jnp.int32(1), labels)          # (TB, L)
    mask = bits[:, 0:1]
    for l in range(1, L):
        mask = mask | bits[:, l:l + 1]                    # (TB, 1)

    class_ids = jax.lax.broadcasted_iota(jnp.int32, (1, C), 1)     # (1, C) row iota
    y_true = ((mask >> class_ids) & 1).astype(jnp.float32)         # (TB, C) in {0,1}
    # sigmoid is monotone with sigmoid(0) == THRESHOLD, so threshold the raw logits.
    y_pred = (logits >= 0.0).astype(jnp.float32)                   # (TB, C) in {0,1}
    prod = y_true * y_pred

    # Batch-axis reduction on the otherwise-idle MXU: ones(8, TB) @ X gives the per-class
    # column sums replicated across 8 rows; f32 accumulation into the resident output
    # blocks (exact for 0/1 inputs up to 2^24 counts per class).
    ones_lhs = jnp.ones((_ACC_ROWS, TB), jnp.float32)
    tp_ref[...] += jnp.dot(ones_lhs, prod, preferred_element_type=jnp.float32)
    sp_ref[...] += jnp.dot(ones_lhs, y_pred, preferred_element_type=jnp.float32)
    st_ref[...] += jnp.dot(ones_lhs, y_true, preferred_element_type=jnp.float32)


def f1_loss(logits, labels, *, block_b=2048):
    """logits: (B, NUM_CLASSES) float; labels: (B, L) int indices in [0, NUM_CLASSES]."""
    logits = logits.astype(jnp.float32)
    labels = labels.astype(jnp.int32)
    B, C = logits.shape
    L = labels.shape[1]

    # Split the batch across the leading "parallel" axis, then tile each split along an
    # "arbitrary" reduction axis. block_b=2048 -> ~4 MiB double-buffered inputs plus a few
    # MiB of elementwise temporaries; fits every generation with the 32 MiB scoped limit.
    rows_per_split = _round_up(pl.cdiv(B, _NUM_SPLITS), 8)
    tb = min(block_b, rows_per_split)
    rows_per_split = _round_up(rows_per_split, tb)
    nb = rows_per_split // tb
    bp = _NUM_SPLITS * rows_per_split
    if bp != B:
        pad = bp - B
        # Padded rows: label == NUM_CLASSES (the dropped padding class) -> y_true == 0,
        # logit == -1 -> y_pred == 0, so they contribute nothing to any count.
        labels = jnp.concatenate(
            [labels, jnp.full((pad, L), NUM_CLASSES, jnp.int32)], axis=0)
        logits = jnp.concatenate(
            [logits, jnp.full((pad, C), -1.0, jnp.float32)], axis=0)

    out_sds = jax.ShapeDtypeStruct((_NUM_SPLITS, _ACC_ROWS, C), jnp.float32)
    part_spec = pl.BlockSpec((None, _ACC_ROWS, C), lambda i, j: (i, 0, 0))

    tp_p, sp_p, st_p = pl.pallas_call(
        _f1_partials_kernel,
        out_shape=(out_sds, out_sds, out_sds),
        grid_spec=pltpu.PrefetchScalarGridSpec(
            num_scalar_prefetch=0,
            grid=(_NUM_SPLITS, nb),
            in_specs=[
                pl.BlockSpec((tb, L), lambda i, j: (i * nb + j, 0)),   # labels tile
                pl.BlockSpec((tb, C), lambda i, j: (i * nb + j, 0)),   # logits tile
            ],
            out_specs=[part_spec, part_spec, part_spec],
        ),
        compiler_params=pltpu.CompilerParams(
            dimension_semantics=("parallel", "arbitrary"),
            vmem_limit_bytes=32 * 1024 * 1024),
    )(labels, logits)

    # Tiny epilogue: combine per-core partials (row 0 of the replicated MXU result) and
    # apply the NaN-scrubbed macro-F1: f1 = 2*tp / (2*tp + fp + fn), denom == 0 -> 0.
    tp = tp_p[:, 0, :].sum(axis=0)
    sum_pred = sp_p[:, 0, :].sum(axis=0)
    sum_true = st_p[:, 0, :].sum(axis=0)
    denom = sum_pred + sum_true                      # == 2*tp + fp + fn
    f1 = jnp.where(denom == 0.0, 0.0,
                   2.0 * tp / jnp.where(denom == 0.0, 1.0, denom))
    return 1.0 - jnp.mean(f1)


def f1_loss_ref(logits, labels):
    """Pure-JAX reference mirroring the PyTorch forward."""
    khot = jnp.eye(NUM_CLASSES + 1, dtype=jnp.float32)[labels]       # (B, L, 29)
    y_true = jnp.clip(khot.sum(axis=1), 0.0, 1.0)[:, :-1]            # (B, 28)
    y_pred = (jax.nn.sigmoid(logits) >= THRESHOLD).astype(jnp.float32)
    tp = (y_true * y_pred).sum(0)
    fp = ((1.0 - y_true) * y_pred).sum(0)
    fn = (y_true * (1.0 - y_pred)).sum(0)
    p = tp / (tp + fp)
    r = tp / (tp + fn)
    f1 = 2.0 * p * r / (p + r)
    f1 = jnp.where(jnp.isnan(f1), 0.0, f1)
    return 1.0 - f1.mean()


if __name__ == "__main__":
    key = jax.random.PRNGKey(0)
    k_logits, k_labels = jax.random.split(key)

    # Small shapes consistent with the module: raw (B, 28) predictions and padded
    # multi-label index targets with padding class 28.
    B, L = 8, 5
    logits = jax.random.normal(k_logits, (B, NUM_CLASSES), dtype=jnp.float32)
    labels = jax.random.randint(k_labels, (B, L), 0, NUM_CLASSES + 1, dtype=jnp.int32)

    loss = jax.block_until_ready(f1_loss(logits, labels))
    ref = jax.block_until_ready(f1_loss_ref(logits, labels))
    assert jnp.isfinite(loss), "loss is not finite"
    assert jnp.allclose(loss, ref, atol=1e-5, rtol=1e-5), (loss, ref)

    # Exercise the multi-step accumulation / padding path (nb > 1 per split).
    k_logits2, k_labels2 = jax.random.split(jax.random.PRNGKey(1))
    B2 = 40
    logits2 = jax.random.normal(k_logits2, (B2, NUM_CLASSES), dtype=jnp.float32)
    labels2 = jax.random.randint(k_labels2, (B2, L), 0, NUM_CLASSES + 1, dtype=jnp.int32)
    loss2 = jax.block_until_ready(f1_loss(logits2, labels2, block_b=16))
    ref2 = jax.block_until_ready(f1_loss_ref(logits2, labels2))
    assert jnp.allclose(loss2, ref2, atol=1e-5, rtol=1e-5), (loss2, ref2)

    print("KERNEL_OK")
</pallas_src>

<mosaic_0001>
module attributes {stable_mosaic.version = 11 : i64} {
  func.func @_f1_partials_kernel(%arg0: i32, %arg1: i32, %arg2: memref<8x5xi32, #tpu.memory_space<vmem>>, %arg3: memref<8x28xf32, #tpu.memory_space<vmem>>, %arg4: memref<1x8x28xf32, #tpu.memory_space<vmem>>, %arg5: memref<1x8x28xf32, #tpu.memory_space<vmem>>, %arg6: memref<1x8x28xf32, #tpu.memory_space<vmem>>) attributes {dimension_semantics = [#tpu.dimension_semantics<parallel>, #tpu.dimension_semantics<arbitrary>], iteration_bounds = array<i64: 2, 1>, scalar_prefetch = 0 : i64, scratch_operands = 0 : i64, tpu.core_type = #tpu.core_type<tc>, window_params = [{transform_indices = @transform_0, window_bounds = array<i64: 8, 5>}, {transform_indices = @transform_1, window_bounds = array<i64: 8, 28>}, {transform_indices = @transform_2, window_bounds = array<i64: 1, 8, 28>}, {transform_indices = @transform_3, window_bounds = array<i64: 1, 8, 28>}, {transform_indices = @transform_4, window_bounds = array<i64: 1, 8, 28>}]} {
    %c0_i32 = arith.constant 0 : i32
    %0 = arith.cmpi eq, %arg1, %c0_i32 : i32
    %1 = arith.extui %0 : i1 to i32
    %c0_i32_0 = arith.constant 0 : i32
    %2 = arith.cmpi ne, %1, %c0_i32_0 : i32
    scf.if %2 {
      %cst_27 = arith.constant 0.000000e+00 : f32
      %50 = vector.broadcast %cst_27 : f32 to vector<8x28xf32>
      %c0_28 = arith.constant 0 : index
      %c0_29 = arith.constant 0 : index
      %c0_30 = arith.constant 0 : index
      %51 = vector.load %arg4[%c0_28, %c0_29, %c0_30] : memref<1x8x28xf32, #tpu.memory_space<vmem>>, vector<1x8x28xf32>
      %52 = vector.shape_cast %51 : vector<1x8x28xf32> to vector<8x28xf32>
      %53 = vector.shape_cast %50 : vector<8x28xf32> to vector<1x8x28xf32>
      tpu.vector_store %arg4[%c0_28, %c0_29, %c0_30], %53 {strides = array<i32>} : memref<1x8x28xf32, #tpu.memory_space<vmem>>, vector<1x8x28xf32>,
      %cst_31 = arith.constant 0.000000e+00 : f32
      %54 = vector.broadcast %cst_31 : f32 to vector<8x28xf32>
      %c0_32 = arith.constant 0 : index
      %c0_33 = arith.constant 0 : index
      %c0_34 = arith.constant 0 : index
      %55 = vector.load %arg5[%c0_32, %c0_33, %c0_34] : memref<1x8x28xf32, #tpu.memory_space<vmem>>, vector<1x8x28xf32>
      %56 = vector.shape_cast %55 : vector<1x8x28xf32> to vector<8x28xf32>
      %57 = vector.shape_cast %54 : vector<8x28xf32> to vector<1x8x28xf32>
      tpu.vector_store %arg5[%c0_32, %c0_33, %c0_34], %57 {strides = array<i32>} : memref<1x8x28xf32, #tpu.memory_space<vmem>>, vector<1x8x28xf32>,
      %cst_35 = arith.constant 0.000000e+00 : f32
      %58 = vector.broadcast %cst_35 : f32 to vector<8x28xf32>
      %c0_36 = arith.constant 0 : index
      %c0_37 = arith.constant 0 : index
      %c0_38 = arith.constant 0 : index
      %59 = vector.load %arg6[%c0_36, %c0_37, %c0_38] : memref<1x8x28xf32, #tpu.memory_space<vmem>>, vector<1x8x28xf32>
      %60 = vector.shape_cast %59 : vector<1x8x28xf32> to vector<8x28xf32>
      %61 = vector.shape_cast %58 : vector<8x28xf32> to vector<1x8x28xf32>
      tpu.vector_store %arg6[%c0_36, %c0_37, %c0_38], %61 {strides = array<i32>} : memref<1x8x28xf32, #tpu.memory_space<vmem>>, vector<1x8x28xf32>,
    } else {
    }
    %c0 = arith.constant 0 : index
    %c0_1 = arith.constant 0 : index
    %3 = vector.load %arg2[%c0, %c0_1] : memref<8x5xi32, #tpu.memory_space<vmem>>, vector<8x5xi32>
    %c0_2 = arith.constant 0 : index
    %c0_3 = arith.constant 0 : index
    %4 = vector.load %arg3[%c0_2, %c0_3] : memref<8x28xf32, #tpu.memory_space<vmem>>, vector<8x28xf32>
    %c1_i32 = arith.constant 1 : i32
    %5 = vector.broadcast %c1_i32 : i32 to vector<8x5xi32>
    %6 = arith.shli %5, %3 : vector<8x5xi32>
    %7 = vector.extract_strided_slice %6 {offsets = [0, 0], sizes = [8, 1], strides = [1, 1]} : vector<8x5xi32> to vector<8x1xi32>
    %8 = vector.extract_strided_slice %6 {offsets = [0, 1], sizes = [8, 1], strides = [1, 1]} : vector<8x5xi32> to vector<8x1xi32>
    %9 = arith.ori %7, %8 : vector<8x1xi32>
    %10 = vector.extract_strided_slice %6 {offsets = [0, 2], sizes = [8, 1], strides = [1, 1]} : vector<8x5xi32> to vector<8x1xi32>
    %11 = arith.ori %9, %10 : vector<8x1xi32>
    %12 = vector.extract_strided_slice %6 {offsets = [0, 3], sizes = [8, 1], strides = [1, 1]} : vector<8x5xi32> to vector<8x1xi32>
    %13 = arith.ori %11, %12 : vector<8x1xi32>
    %14 = vector.extract_strided_slice %6 {offsets = [0, 4], sizes = [8, 1], strides = [1, 1]} : vector<8x5xi32> to vector<8x1xi32>
    %15 = arith.ori %13, %14 : vector<8x1xi32>
    %16 = tpu.iota {dimensions = array<i32: 1>} : vector<1x28xi32>
    %17 = vector.broadcast %15 : vector<8x1xi32> to vector<8x28xi32>
    %18 = vector.broadcast %16 : vector<1x28xi32> to vector<8x28xi32>
    %19 = arith.shrsi %17, %18 : vector<8x28xi32>
    %c1_i32_4 = arith.constant 1 : i32
    %20 = vector.broadcast %c1_i32_4 : i32 to vector<8x28xi32>
    %21 = arith.andi %19, %20 : vector<8x28xi32>
    %22 = arith.sitofp %21 : vector<8x28xi32> to vector<8x28xf32>
    %cst = arith.constant 0.000000e+00 : f32
    %23 = vector.broadcast %cst : f32 to vector<8x28xf32>
    %24 = arith.cmpf oge, %4, %23 : vector<8x28xf32>
    %25 = arith.extui %24 : vector<8x28xi1> to vector<8x28xi32>
    %26 = arith.sitofp %25 : vector<8x28xi32> to vector<8x28xf32>
    %27 = arith.mulf %22, %26 : vector<8x28xf32>
    %cst_5 = arith.constant 1.000000e+00 : f32
    %28 = vector.broadcast %cst_5 : f32 to vector<8x8xf32>
    %c0_6 = arith.constant 0 : index
    %c0_7 = arith.constant 0 : index
    %c0_8 = arith.constant 0 : index
    %29 = vector.load %arg4[%c0_6, %c0_7, %c0_8] : memref<1x8x28xf32, #tpu.memory_space<vmem>>, vector<1x8x28xf32>
    %30 = vector.shape_cast %29 : vector<1x8x28xf32> to vector<8x28xf32>
    %cst_9 = arith.constant dense<0.000000e+00> : vector<8x28xf32>
    %31 = tpu.matmul %28, %27, %cst_9 {dimension_numbers = #tpu.dot_dimension_numbers<[1], [0], [0], [1], [0, 0, 1, 1], [], []>} : vector<8x8xf32>, vector<8x28xf32>, vector<8x28xf32> -> vector<8x28xf32>
    %32 = arith.addf %30, %31 : vector<8x28xf32>
    %c0_10 = arith.constant 0 : index
    %c0_11 = arith.constant 0 : index
    %c0_12 = arith.constant 0 : index
    %33 = vector.load %arg4[%c0_10, %c0_11, %c0_12] : memref<1x8x28xf32, #tpu.memory_space<vmem>>, vector<1x8x28xf32>
    %34 = vector.shape_cast %33 : vector<1x8x28xf32> to vector<8x28xf32>
    %35 = vector.shape_cast %32 : vector<8x28xf32> to vector<1x8x28xf32>
    tpu.vector_store %arg4[%c0_10, %c0_11, %c0_12], %35 {strides = array<i32>} : memref<1x8x28xf32, #tpu.memory_space<vmem>>, vector<1x8x28xf32>,
    %c0_13 = arith.constant 0 : index
    %c0_14 = arith.constant 0 : index
    %c0_15 = arith.constant 0 : index
    %36 = vector.load %arg5[%c0_13, %c0_14, %c0_15] : memref<1x8x28xf32, #tpu.memory_space<vmem>>, vector<1x8x28xf32>
    %37 = vector.shape_cast %36 : vector<1x8x28xf32> to vector<8x28xf32>
    %cst_16 = arith.constant dense<0.000000e+00> : vector<8x28xf32>
    %38 = tpu.matmul %28, %26, %cst_16 {dimension_numbers = #tpu.dot_dimension_numbers<[1], [0], [0], [1], [0, 0, 1, 1], [], []>} : vector<8x8xf32>, vector<8x28xf32>, vector<8x28xf32> -> vector<8x28xf32>
    %39 = arith.addf %37, %38 : vector<8x28xf32>
    %c0_17 = arith.constant 0 : index
    %c0_18 = arith.constant 0 : index
    %c0_19 = arith.constant 0 : index
    %40 = vector.load %arg5[%c0_17, %c0_18, %c0_19] : memref<1x8x28xf32, #tpu.memory_space<vmem>>, vector<1x8x28xf32>
    %41 = vector.shape_cast %40 : vector<1x8x28xf32> to vector<8x28xf32>
    %42 = vector.shape_cast %39 : vector<8x28xf32> to vector<1x8x28xf32>
    tpu.vector_store %arg5[%c0_17, %c0_18, %c0_19], %42 {strides = array<i32>} : memref<1x8x28xf32, #tpu.memory_space<vmem>>, vector<1x8x28xf32>,
    %c0_20 = arith.constant 0 : index
    %c0_21 = arith.constant 0 : index
    %c0_22 = arith.constant 0 : index
    %43 = vector.load %arg6[%c0_20, %c0_21, %c0_22] : memref<1x8x28xf32, #tpu.memory_space<vmem>>, vector<1x8x28xf32>
    %44 = vector.shape_cast %43 : vector<1x8x28xf32> to vector<8x28xf32>
    %cst_23 = arith.constant dense<0.000000e+00> : vector<8x28xf32>
    %45 = tpu.matmul %28, %22, %cst_23 {dimension_numbers = #tpu.dot_dimension_numbers<[1], [0], [0], [1], [0, 0, 1, 1], [], []>} : vector<8x8xf32>, vector<8x28xf32>, vector<8x28xf32> -> vector<8x28xf32>
    %46 = arith.addf %44, %45 : vector<8x28xf32>
    %c0_24 = arith.constant 0 : index
    %c0_25 = arith.constant 0 : index
    %c0_26 = arith.constant 0 : index
    %47 = vector.load %arg6[%c0_24, %c0_25, %c0_26] : memref<1x8x28xf32, #tpu.memory_space<vmem>>, vector<1x8x28xf32>
    %48 = vector.shape_cast %47 : vector<1x8x28xf32> to vector<8x28xf32>
    %49 = vector.shape_cast %46 : vector<8x28xf32> to vector<1x8x28xf32>
    tpu.vector_store %arg6[%c0_24, %c0_25, %c0_26], %49 {strides = array<i32>} : memref<1x8x28xf32, #tpu.memory_space<vmem>>, vector<1x8x28xf32>,
    return
  }
  func.func @transform_0(%arg0: i32, %arg1: i32) -> (i32, i32) {
    %c1_i32 = arith.constant 1 : i32
    %0 = arith.muli %arg0, %c1_i32 : i32
    %1 = arith.addi %0, %arg1 : i32
    %c0_i32 = arith.constant 0 : i32
    %c0_i32_0 = arith.constant 0 : i32
    return %1, %c0_i32 : i32, i32
  }
  func.func @transform_1(%arg0: i32, %arg1: i32) -> (i32, i32) {
    %c1_i32 = arith.constant 1 : i32
    %0 = arith.muli %arg0, %c1_i32 : i32
    %1 = arith.addi %0, %arg1 : i32
    %c0_i32 = arith.constant 0 : i32
    %c0_i32_0 = arith.constant 0 : i32
    return %1, %c0_i32 : i32, i32
  }
  func.func @transform_2(%arg0: i32, %arg1: i32) -> (i32, i32, i32) {
    %c0_i32 = arith.constant 0 : i32
    %c0_i32_0 = arith.constant 0 : i32
    %c0_i32_1 = arith.constant 0 : i32
    return %arg0, %c0_i32, %c0_i32_0 : i32, i32, i32
  }
  func.func @transform_3(%arg0: i32, %arg1: i32) -> (i32, i32, i32) {
    %c0_i32 = arith.constant 0 : i32
    %c0_i32_0 = arith.constant 0 : i32
    %c0_i32_1 = arith.constant 0 : i32
    return %arg0, %c0_i32, %c0_i32_0 : i32, i32, i32
  }
  func.func @transform_4(%arg0: i32, %arg1: i32) -> (i32, i32, i32) {
    %c0_i32 = arith.constant 0 : i32
    %c0_i32_0 = arith.constant 0 : i32
    %c0_i32_1 = arith.constant 0 : i32
    return %arg0, %c0_i32, %c0_i32_0 : i32, i32, i32
  }
}

</mosaic_0001>

<llo_original>
// kernel: tpu_custom_call.1
$region0: #{tpu_custom_call.1}
  #allocation0 [shape = 'u32[]', space=smem, size = 0x4, offset = 0x4, fixed_abs, tag = 'smem constant byte address 0x4 - core index']
  #allocation1 [shape = 'u32[144,128]{1,0:T(1,128)}', space=vmem, size = 0x12000, scoped, tag = 'internal scratch']
  %s0 = inlined_call_operand.vmem [shape: s32[16,5], index: 0, kind: input, shape index: {}]
  %s1 = inlined_call_operand.vmem [shape: f32[16,28], index: 1, kind: input, shape index: {}]
  %s2 = inlined_call_operand.hbm [shape: f32[2,8,28], index: 2, kind: output, shape index: {0}]
  %s3 = inlined_call_operand.hbm [shape: f32[2,8,28], index: 3, kind: output, shape index: {1}]
  %s4 = inlined_call_operand.hbm [shape: f32[2,8,28], index: 4, kind: output, shape index: {2}]
  %5 = xla_tuple %s2, %s3, %s4
  %s6 = sld [smem:[#allocation0]]
  $region61: #{tpu_custom_call.1} parent=0
    _
  %s8 = ssub.s32 1, %s6
  %s9 = scalar_select 0, %s8, %s6
  $region1: #{tpu_custom_call.1} parent=0
    #allocation2 [shape = 'u8[8192]{0}', space=vmem, size = 0x2000, scoped, tag = 'output window, operand 0']
    #allocation3 [shape = 's32[2]{0}', space=sflag, size = 0x8, scoped, tag = 'scoped memory for tpu_custom_call.1']
    #allocation4 [shape = 'u8[8192]{0}', space=vmem, size = 0x2000, scoped, tag = 'output window, operand 1']
    #allocation5 [shape = 's32[2]{0}', space=sflag, size = 0x8, scoped, tag = 'scoped memory for tpu_custom_call.1']
    #allocation6 [shape = 'u8[8192]{0}', space=vmem, size = 0x2000, scoped, tag = 'output window, operand 2']
    %10 = vsyncpa [#allocation3], 0
    %s11 = scalar_lea.sflag [#allocation3], 1
    %12 = vsyncpa %s11, 0
    %13 = vsyncpa [#allocation5], 0
    %s14 = scalar_lea.sflag [#allocation5], 1
    %15 = vsyncpa %s14, 0
    loop: start=0, step=1, limit=4
    $region2: #{tpu_custom_call.1} parent=1 // loop_pre_header
      _
    $region3: #{tpu_custom_call.1} parent=1 // loop_header
      %s17 = sphi 0, %s21
      %p18 = scmp.ge.s32.totalorder %s17, 4
      %s24 = sphi 0, %s36
      %s25 = sphi 0, %s32
      %s26 = sphi 0, %s24
      %s27 = sphi 0, %s25
      %s28 = sphi 0, %s26
      %s29 = sphi 0, %s27
      %s41 = sphi 0, %s43
      %s44 = sphi 0, %s41
      %s45 = sphi 0, %s44
      %s61 = sphi 0, %s45
      %s69 = sphi 0, %s71
      %s72 = sphi 0, %s69
      %s73 = sphi 0, %s72
      %s89 = sphi 0, %s73
      %s95 = sphi 0, %s97
      %s98 = sphi 0, %s95
      %s99 = sphi 0, %s98
      %s115 = sphi 0, %s99
      %s121 = sphi 0, %s123
      %s124 = sphi 0, %s121
      %s125 = sphi 0, %s124
      %s141 = sphi 0, %s125
      %s147 = sphi 0, %s149
      %s150 = sphi 0, %s147
      %s151 = sphi 0, %s150
      %s167 = sphi 0, %s151
    $region4: #{tpu_custom_call.1} parent=1 // loop_header_branch
      %20 = sbr.rel (%p18) target = $region8
    $region5: #{tpu_custom_call.1} parent=1 // loop_body
      %s22 = ssub.s32 %s17, 1
      %s23 = ssub.s32 %s17, 2
      %s30 = sadd.s32 1, %s25
      %p31 = scmp.ge.s32.totalorder %s30, 1
      %s32 = scalar_select %p31, 0, %s30
      %s33 = sadd.s32 1, %s24
      %s34 = scalar_select %p31, %s33, %s24
      %p35 = scmp.ge.s32.totalorder %s34, 2
      %s36 = scalar_select %p35, 0, %s34
      %s37 = sadd.s32 %s24, %s25
      %s38 = sadd.s32 %s36, %s32
      %s39 = ssub.s32 %s37, %s38
      %p40 = scmp.eq.s32.totalorder %s39, 0
      %s42 = sadd.s32 %s41, 1
      %s43 = scalar_select %p40, %s41, %s42
      %p46 = pneg %p40
      %p47 = scmp.eq.s32.totalorder %s17, 1
      %p48 = por %p46, %p47
      %p49 = scmp.ne.s32.totalorder %s41, %s44
      %p50 = scmp.eq.s32.totalorder %s17, 0
      %p51 = por %p49, %p50
      %p52 = scmp.ne.s32.totalorder %s41, %s44
      %p53 = scmp.eq.s32.totalorder %s22, 1
      %p54 = por %p52, %p53
      %p55 = scmp.ne.s32.totalorder %s44, %s45
      %p56 = scmp.eq.s32.totalorder %s22, 0
      %p57 = por %p55, %p56
      %p58 = scmp.ne.s32.totalorder %s44, %s45
      %p59 = scmp.eq.s32.totalorder %s23, 1
      %p60 = por %p58, %p59
      %p62 = scmp.ne.s32.totalorder %s45, %s61
      %p63 = scmp.eq.s32.totalorder %s23, 0
      %p64 = por %p62, %p63
      %s65 = sadd.s32 %s24, %s25
      %s66 = sadd.s32 %s36, %s32
      %s67 = ssub.s32 %s65, %s66
      %p68 = scmp.eq.s32.totalorder %s67, 0
      %s70 = sadd.s32 %s69, 1
      %s71 = scalar_select %p68, %s69, %s70
      %p74 = pneg %p68
      %p75 = scmp.eq.s32.totalorder %s17, 1
      %p76 = por %p74, %p75
      %p77 = scmp.ne.s32.totalorder %s69, %s72
      %p78 = scmp.eq.s32.totalorder %s17, 0
      %p79 = por %p77, %p78
      %p80 = scmp.ne.s32.totalorder %s69, %s72
      %p81 = scmp.eq.s32.totalorder %s22, 1
      %p82 = por %p80, %p81
      %p83 = scmp.ne.s32.totalorder %s72, %s73
      %p84 = scmp.eq.s32.totalorder %s22, 0
      %p85 = por %p83, %p84
      %p86 = scmp.ne.s32.totalorder %s72, %s73
      %p87 = scmp.eq.s32.totalorder %s23, 1
      %p88 = por %p86, %p87
      %p90 = scmp.ne.s32.totalorder %s73, %s89
      %p91 = scmp.eq.s32.totalorder %s23, 0
      %p92 = por %p90, %p91
      %s93 = ssub.s32 %s24, %s36
      %p94 = scmp.eq.s32.totalorder %s93, 0
      %s96 = sadd.s32 %s95, 1
      %s97 = scalar_select %p94, %s95, %s96
      %p100 = pneg %p94
      %p101 = scmp.eq.s32.totalorder %s17, 1
      %p102 = por %p100, %p101
      %p103 = scmp.ne.s32.totalorder %s95, %s98
      %p104 = scmp.eq.s32.totalorder %s17, 0
      %p105 = por %p103, %p104
      %p106 = scmp.ne.s32.totalorder %s95, %s98
      %p107 = scmp.eq.s32.totalorder %s22, 1
      %p108 = por %p106, %p107
      %p109 = scmp.ne.s32.totalorder %s98, %s99
      %p110 = scmp.eq.s32.totalorder %s22, 0
      %p111 = por %p109, %p110
      %p112 = scmp.ne.s32.totalorder %s98, %s99
      %p113 = scmp.eq.s32.totalorder %s23, 1
      %p114 = por %p112, %p113
      %p116 = scmp.ne.s32.totalorder %s99, %s115
      %p117 = scmp.eq.s32.totalorder %s23, 0
      %p118 = por %p116, %p117
      %s119 = ssub.s32 %s24, %s36
      %p120 = scmp.eq.s32.totalorder %s119, 0
      %s122 = sadd.s32 %s121, 1
      %s123 = scalar_select %p120, %s121, %s122
      %p126 = pneg %p120
      %p127 = scmp.eq.s32.totalorder %s17, 1
      %p128 = por %p126, %p127
      %p129 = scmp.ne.s32.totalorder %s121, %s124
      %p130 = scmp.eq.s32.totalorder %s17, 0
      %p131 = por %p129, %p130
      %p132 = scmp.ne.s32.totalorder %s121, %s124
      %p133 = scmp.eq.s32.totalorder %s22, 1
      %p134 = por %p132, %p133
      %p135 = scmp.ne.s32.totalorder %s124, %s125
      %p136 = scmp.eq.s32.totalorder %s22, 0
      %p137 = por %p135, %p136
      %p138 = scmp.ne.s32.totalorder %s124, %s125
      %p139 = scmp.eq.s32.totalorder %s23, 1
      %p140 = por %p138, %p139
      %p142 = scmp.ne.s32.totalorder %s125, %s141
      %p143 = scmp.eq.s32.totalorder %s23, 0
      %p144 = por %p142, %p143
      %s145 = ssub.s32 %s24, %s36
      %p146 = scmp.eq.s32.totalorder %s145, 0
      %s148 = sadd.s32 %s147, 1
      %s149 = scalar_select %p146, %s147, %s148
      %p152 = pneg %p146
      %p153 = scmp.eq.s32.totalorder %s17, 1
      %p154 = por %p152, %p153
      %p155 = scmp.ne.s32.totalorder %s147, %s150
      %p156 = scmp.eq.s32.totalorder %s17, 0
      %p157 = por %p155, %p156
      %p158 = scmp.ne.s32.totalorder %s147, %s150
      %p159 = scmp.eq.s32.totalorder %s22, 1
      %p160 = por %p158, %p159
      %p161 = scmp.ne.s32.totalorder %s150, %s151
      %p162 = scmp.eq.s32.totalorder %s22, 0
      %p163 = por %p161, %p162
      %p164 = scmp.ne.s32.totalorder %s150, %s151
      %p165 = scmp.eq.s32.totalorder %s23, 1
      %p166 = por %p164, %p165
      %p168 = scmp.ne.s32.totalorder %s151, %s167
      %p169 = scmp.eq.s32.totalorder %s23, 0
      %p170 = por %p168, %p169
      %p171 = scmp.le.s32.totalorder 1, %s17
      %p172 = scmp.lt.s32.totalorder %s17, 3
      %p173 = pnand %p171, %p172
      %p174 = pneg %p173
      // Predicated region
      $region9: #{tpu_custom_call.1} parent=5 // pred_check
        _
      $region10: #{tpu_custom_call.1} parent=5 // pred_check_branch
        %176 = sbr.rel (%p173) target = $region12
      $region11: #{tpu_custom_call.1} parent=5 // pred_region
        %s177 = ssub.s32 %s17, 1
      $region12: #{tpu_custom_call.1} parent=5 // pred_fallthru
        _
      %p178 = scmp.lt.s32.totalorder %s17, 2
      // Predicated region
      $region13: #{tpu_custom_call.1} parent=5 // pred_check
        %p179 = pneg %p178
      $region14: #{tpu_custom_call.1} parent=5 // pred_check_branch
        %181 = sbr.rel (%p179) target = $region16
      $region15: #{tpu_custom_call.1} parent=5 // pred_region
        // Predicated region
        $region17: #{tpu_custom_call.1} parent=15 // pred_check
          %p182 = pneg %p51
        $region18: #{tpu_custom_call.1} parent=15 // pred_check_branch
          %184 = sbr.rel (%p182) target = $region20
        $region19: #{tpu_custom_call.1} parent=15 // pred_region
          %s185 = sadd.s32 %s24, %s25
          %p186 = scmp.lt.s32.totalorder %s185, 1
          %s187 = scalar_select %p186, %s185, 1
          %s188 = smul.addr %s187, 8
          %s189 = scalar_lea.vmem %s0, %s188
          %s190 = sadd.s32 %s24, %s25
        $region20: #{tpu_custom_call.1} parent=15 // pred_fallthru
          _
        // Predicated region
        $region21: #{tpu_custom_call.1} parent=15 // pred_check
          %p191 = pneg %p79
        $region22: #{tpu_custom_call.1} parent=15 // pred_check_branch
          %193 = sbr.rel (%p191) target = $region24
        $region23: #{tpu_custom_call.1} parent=15 // pred_region
          %s194 = sadd.s32 %s24, %s25
          %p195 = scmp.lt.s32.totalorder %s194, 1
          %s196 = scalar_select %p195, %s194, 1
          %s197 = smul.addr %s196, 8
          %s198 = scalar_lea.vmem %s1, %s197
          %s199 = sadd.s32 %s24, %s25
        $region24: #{tpu_custom_call.1} parent=15 // pred_fallthru
          _
      $region16: #{tpu_custom_call.1} parent=5 // pred_fallthru
        _
      %p200 = scmp.le.s32.totalorder 1, %s17
      %p201 = scmp.lt.s32.totalorder %s17, 3
      %p202 = pnand %p200, %p201
      %p203 = pneg %p202
      // Predicated region
      $region25: #{tpu_custom_call.1} parent=5 // pred_check
        _
      $region26: #{tpu_custom_call.1} parent=5 // pred_check_branch
        %205 = sbr.rel (%p202) target = $region28
      $region27: #{tpu_custom_call.1} parent=5 // pred_region
        %s206 = ssub.s32 %s17, 1
        %s207 = sadd.s32 %s26, %s27
        %p208 = scmp.lt.s32.totalorder %s207, 1
        %s209 = scalar_select %p208, %s207, 1
        %s210 = smul.addr %s209, 8
        %s211 = scalar_lea.vmem %s0, %s210
        %p212 = pneg %p57
        %p213 = pneg %p54
        %s214 = sadd.s32 %s26, %s27
        %p215 = scmp.lt.s32.totalorder %s214, 1
        %s216 = scalar_select %p215, %s214, 1
        %s217 = smul.addr %s216, 8
        %s218 = scalar_lea.vmem %s1, %s217
        %p219 = pneg %p85
        %p220 = pneg %p82
        %p221 = pneg %p111
        %p222 = pneg %p108
        %s223 = sand.u32 %s98, 1
        %s224 = scalar_lea.sflag [#allocation3], %s223
        %s225 = sand.u32 %s98, 1
        %s226 = smul.addr %s225, 8
        %s227 = scalar_lea.vmem [#allocation2], %s226
        %p228 = pneg %p137
        %p229 = pneg %p134
        %s230 = sand.u32 %s22, 1
        %s231 = scalar_lea.sflag [#allocation5], %s230
        %s232 = sand.u32 %s124, 1
        %s233 = smul.addr %s232, 8
        %s234 = scalar_lea.vmem [#allocation4], %s233
        %p235 = pneg %p163
        %p236 = pneg %p160
        %s237 = sand.u32 %s22, 1
        %s238 = scalar_lea.sflag [#allocation5], %s237
        %s239 = sand.u32 %s150, 1
        %s240 = smul.addr %s239, 8
        %s241 = scalar_lea.vmem [#allocation6], %s240
        %s242 = sadd.s32 %s26, %s27
        %p243 = scmp.lt.s32.totalorder %s242, 1
        %s244 = scalar_select %p243, %s242, 1
        %s245 = smul.addr %s244, 8
        %s246 = scalar_lea.vmem %s0, %s245
        %s247 = sadd.s32 %s26, %s27
        %s248 = sadd.s32 %s26, %s27
        %p249 = scmp.lt.s32.totalorder %s248, 1
        %s250 = scalar_select %p249, %s248, 1
        %s251 = smul.addr %s250, 8
        %s252 = scalar_lea.vmem %s1, %s251
        %s253 = sadd.s32 %s26, %s27
        %p254 = scmp.eq.s32.totalorder %s27, 0
        // Predicated region
        $region29: #{tpu_custom_call.1} parent=27 // pred_check
          %p255 = pneg %p254
        $region30: #{tpu_custom_call.1} parent=27 // pred_check_branch
          %257 = sbr.rel (%p255) target = $region32
        $region31: #{tpu_custom_call.1} parent=27 // pred_region
          %vm258 = vcmask 228352
          %259 = vst.msk [vmem:[%s227] sm:$0xff] %vm258, 0.0
          %260 = vst.msk [vmem:[%s234] sm:$0xff] %vm258, 0.0
          %261 = vst.msk [vmem:[%s241] sm:$0xff] %vm258, 0.0
        $region32: #{tpu_custom_call.1} parent=27 // pred_fallthru
          _
        %v262 = vld [vmem:[%s246] sm:$0xff]
        %v263 = vld [vmem:[%s252] sm:$0xff]
        %v264 = vshll.u32 1, %v262
        %265 = vrot.lane.b32.xlu0 %v264, 127
        %v266 = vpop.permute.xlu0 %265
        %v267 = vor.u32 %v264, %v266
        %268 = vrot.lane.b32.xlu0 %v264, 126
        %v269 = vpop.permute.xlu0 %268
        %v270 = vor.u32 %v267, %v269
        %271 = vrot.lane.b32.xlu0 %v264, 125
        %v272 = vpop.permute.xlu0 %271
        %v273 = vor.u32 %v270, %v272
        %274 = vrot.lane.b32.xlu0 %v264, 124
        %v275 = vpop.permute.xlu0 %274
        %v276 = vor.u32 %v273, %v275
        %v277 = vlaneseq
        %v278 = vand.u32 %v277, 127
        %279 = vset.pattern.permute.xlu0 0
        %280 = vperm.xlu0 %279, %v276
        %v281 = vpop.permute.xlu0 %280
        %v282 = vshra.s32 %v281, %v278
        %v283 = vand.u32 %v282, 1
        %v284 = vcvt.s32.f32 %v283
        %vm285 = vcmp.ge.f32.partialorder %v263, 0.0
        %v286 = vsel %vm285, 1, 0
        %v287 = vcvt.s32.f32 %v286
        %v288 = vmul.f32 %v284, %v287
        %v289 = vld [vmem:[%s227] sm:$0xff]
        %vm290 = vcmask 64512
        %v292 = vsel %vm290, 1.0, 0
        %294 = vmatprep.subr.mxu0 0.0
        %295 = vmatpush1.msra.mxu0 %v288
        %296 = vmatprep.subr.mxu0 0.0
        %297 = vmatpush1.msra.mxu0 0.0
        %298 = vmatprep.subr.mxu0 0.0
        %299 = vmatpush1.msra.mxu0 0.0
        %300 = vmatprep.subr.mxu0 0.0
        %301 = vmatpush1.msra.mxu0 0.0
        %302 = vmatprep.subr.mxu0 0.0
        %303 = vmatpush1.msra.mxu0 0.0
        %304 = vmatprep.subr.mxu0 0.0
        %305 = vmatpush1.msra.mxu0 0.0
        %306 = vmatprep.subr.mxu0 0.0
        %307 = vmatpush1.msra.mxu0 0.0
        %308 = vmatprep.subr.mxu0 0.0
        %309 = vmatpush1.msra.mxu0 0.0
        %310 = vmatprep.subr.mxu0 0.0
        %311 = vmatpush1.msra.mxu0 0.0
        %312 = vmatprep.subr.mxu0 0.0
        %313 = vmatpush1.msra.mxu0 0.0
        %314 = vmatprep.subr.mxu0 0.0
        %315 = vmatpush1.msra.mxu0 0.0
        %316 = vmatprep.subr.mxu0 0.0
        %317 = vmatpush1.msra.mxu0 0.0
        %318 = vmatprep.subr.mxu0 0.0
        %319 = vmatpush1.msra.mxu0 0.0
        %320 = vmatprep.subr.mxu0 0.0
        %321 = vmatpush1.msra.mxu0 0.0
        %322 = vmatprep.subr.mxu0 0.0
        %323 = vmatpush1.msra.mxu0 0.0
        %324 = vmatprep.subr.mxu0 0.0
        %325 = vmatpush1.msra.mxu0 0.0
        %326 = vmatprep.subr.mxu0 0.0
        %327 = vmatpush1.msra.mxu0 0.0
        %328 = vmatprep.subr.mxu0 0.0
        %329 = vmatpush1.msra.mxu0 0.0
        %330 = vmatprep.subr.mxu0 0.0
        %331 = vmatpush1.msra.mxu0 0.0
        %332 = vmatprep.subr.mxu0 0.0
        %333 = vmatpush1.msra.mxu0 0.0
        %334 = vmatprep.subr.mxu0 0.0
        %335 = vmatpush1.msra.mxu0 0.0
        %336 = vmatprep.subr.mxu0 0.0
        %337 = vmatpush1.msra.mxu0 0.0
        %338 = vmatprep.subr.mxu0 0.0
        %339 = vmatpush1.msra.mxu0 0.0
        %340 = vmatprep.subr.mxu0 0.0
        %341 = vmatpush1.msra.mxu0 0.0
        %342 = vmatprep.subr.mxu0 0.0
        %343 = vmatpush1.msra.mxu0 0.0
        %344 = vmatprep.subr.mxu0 0.0
        %345 = vmatpush1.msra.mxu0 0.0
        %346 = vmatprep.subr.mxu0 0.0
        %347 = vmatpush1.msra.mxu0 0.0
        %348 = vmatprep.subr.mxu0 0.0
        %349 = vmatpush1.msra.mxu0 0.0
        %350 = vmatprep.subr.mxu0 0.0
        %351 = vmatpush1.msra.mxu0 0.0
        %352 = vmatprep.subr.mxu0 0.0
        %353 = vmatpush1.msra.mxu0 0.0
        %354 = vmatprep.subr.mxu0 0.0
        %355 = vmatpush1.msra.mxu0 0.0
        %356 = vmatprep.subr.mxu0 0.0
        %357 = vmatpush1.msra.mxu0 0.0
        %358 = vmatprep.mubr.f32.mxu0 0.0
        %359 = vmatmul.mubr.f32.gmra.mrb[0].mxu0 %v292
        %v360 = vpop.f32.mrb[0].mxu0
        %v361 = vadd.f32 0.0, %v360
        %v362 = vpop.f32.mrb[0].mxu0
        %363 = vdwg.mxu0
        %v364 = vadd.f32 %v289, %v361
        %vm365 = vcmask 228352
        %366 = vst.msk [vmem:[%s227] sm:$0xff] %vm365, %v364
        %v367 = vld [vmem:[%s234] sm:$0xff]
        %368 = vmatprep.subr.mxu0 0.0
        %369 = vmatpush1.msra.mxu0 %v287
        %370 = vmatprep.subr.mxu0 0.0
        %371 = vmatpush1.msra.mxu0 0.0
        %372 = vmatprep.subr.mxu0 0.0
        %373 = vmatpush1.msra.mxu0 0.0
        %374 = vmatprep.subr.mxu0 0.0
        %375 = vmatpush1.msra.mxu0 0.0
        %376 = vmatprep.subr.mxu0 0.0
        %377 = vmatpush1.msra.mxu0 0.0
        %378 = vmatprep.subr.mxu0 0.0
        %379 = vmatpush1.msra.mxu0 0.0
        %380 = vmatprep.subr.mxu0 0.0
        %381 = vmatpush1.msra.mxu0 0.0
        %382 = vmatprep.subr.mxu0 0.0
        %383 = vmatpush1.msra.mxu0 0.0
        %384 = vmatprep.subr.mxu0 0.0
        %385 = vmatpush1.msra.mxu0 0.0
        %386 = vmatprep.subr.mxu0 0.0
        %387 = vmatpush1.msra.mxu0 0.0
        %388 = vmatprep.subr.mxu0 0.0
        %389 = vmatpush1.msra.mxu0 0.0
        %390 = vmatprep.subr.mxu0 0.0
        %391 = vmatpush1.msra.mxu0 0.0
        %392 = vmatprep.subr.mxu0 0.0
        %393 = vmatpush1.msra.mxu0 0.0
        %394 = vmatprep.subr.mxu0 0.0
        %395 = vmatpush1.msra.mxu0 0.0
        %396 = vmatprep.subr.mxu0 0.0
        %397 = vmatpush1.msra.mxu0 0.0
        %398 = vmatprep.subr.mxu0 0.0
        %399 = vmatpush1.msra.mxu0 0.0
        %400 = vmatprep.subr.mxu0 0.0
        %401 = vmatpush1.msra.mxu0 0.0
        %402 = vmatprep.subr.mxu0 0.0
        %403 = vmatpush1.msra.mxu0 0.0
        %404 = vmatprep.subr.mxu0 0.0
        %405 = vmatpush1.msra.mxu0 0.0
        %406 = vmatprep.subr.mxu0 0.0
        %407 = vmatpush1.msra.mxu0 0.0
        %408 = vmatprep.subr.mxu0 0.0
        %409 = vmatpush1.msra.mxu0 0.0
        %410 = vmatprep.subr.mxu0 0.0
        %411 = vmatpush1.msra.mxu0 0.0
        %412 = vmatprep.subr.mxu0 0.0
        %413 = vmatpush1.msra.mxu0 0.0
        %414 = vmatprep.subr.mxu0 0.0
        %415 = vmatpush1.msra.mxu0 0.0
        %416 = vmatprep.subr.mxu0 0.0
        %417 = vmatpush1.msra.mxu0 0.0
        %418 = vmatprep.subr.mxu0 0.0
        %419 = vmatpush1.msra.mxu0 0.0
        %420 = vmatprep.subr.mxu0 0.0
        %421 = vmatpush1.msra.mxu0 0.0
        %422 = vmatprep.subr.mxu0 0.0
        %423 = vmatpush1.msra.mxu0 0.0
        %424 = vmatprep.subr.mxu0 0.0
        %425 = vmatpush1.msra.mxu0 0.0
        %426 = vmatprep.subr.mxu0 0.0
        %427 = vmatpush1.msra.mxu0 0.0
        %428 = vmatprep.subr.mxu0 0.0
        %429 = vmatpush1.msra.mxu0 0.0
        %430 = vmatprep.subr.mxu0 0.0
        %431 = vmatpush1.msra.mxu0 0.0
        %432 = vmatprep.mubr.f32.mxu0 0.0
        %433 = vmatmul.mubr.f32.gmra.mrb[0].mxu0 %v292
        %v434 = vpop.f32.mrb[0].mxu0
        %v435 = vadd.f32 0.0, %v434
        %v436 = vpop.f32.mrb[0].mxu0
        %437 = vdwg.mxu0
        %v438 = vadd.f32 %v367, %v435
        %439 = vst.msk [vmem:[%s234] sm:$0xff] %vm365, %v438
        %v440 = vld [vmem:[%s241] sm:$0xff]
        %441 = vmatprep.subr.mxu0 0.0
        %442 = vmatpush1.msra.mxu0 %v284
        %443 = vmatprep.subr.mxu0 0.0
        %444 = vmatpush1.msra.mxu0 0.0
        %445 = vmatprep.subr.mxu0 0.0
        %446 = vmatpush1.msra.mxu0 0.0
        %447 = vmatprep.subr.mxu0 0.0
        %448 = vmatpush1.msra.mxu0 0.0
        %449 = vmatprep.subr.mxu0 0.0
        %450 = vmatpush1.msra.mxu0 0.0
        %451 = vmatprep.subr.mxu0 0.0
        %452 = vmatpush1.msra.mxu0 0.0
        %453 = vmatprep.subr.mxu0 0.0
        %454 = vmatpush1.msra.mxu0 0.0
        %455 = vmatprep.subr.mxu0 0.0
        %456 = vmatpush1.msra.mxu0 0.0
        %457 = vmatprep.subr.mxu0 0.0
        %458 = vmatpush1.msra.mxu0 0.0
        %459 = vmatprep.subr.mxu0 0.0
        %460 = vmatpush1.msra.mxu0 0.0
        %461 = vmatprep.subr.mxu0 0.0
        %462 = vmatpush1.msra.mxu0 0.0
        %463 = vmatprep.subr.mxu0 0.0
        %464 = vmatpush1.msra.mxu0 0.0
        %465 = vmatprep.subr.mxu0 0.0
        %466 = vmatpush1.msra.mxu0 0.0
        %467 = vmatprep.subr.mxu0 0.0
        %468 = vmatpush1.msra.mxu0 0.0
        %469 = vmatprep.subr.mxu0 0.0
        %470 = vmatpush1.msra.mxu0 0.0
        %471 = vmatprep.subr.mxu0 0.0
        %472 = vmatpush1.msra.mxu0 0.0
        %473 = vmatprep.subr.mxu0 0.0
        %474 = vmatpush1.msra.mxu0 0.0
        %475 = vmatprep.subr.mxu0 0.0
        %476 = vmatpush1.msra.mxu0 0.0
        %477 = vmatprep.subr.mxu0 0.0
        %478 = vmatpush1.msra.mxu0 0.0
        %479 = vmatprep.subr.mxu0 0.0
        %480 = vmatpush1.msra.mxu0 0.0
        %481 = vmatprep.subr.mxu0 0.0
        %482 = vmatpush1.msra.mxu0 0.0
        %483 = vmatprep.subr.mxu0 0.0
        %484 = vmatpush1.msra.mxu0 0.0
        %485 = vmatprep.subr.mxu0 0.0
        %486 = vmatpush1.msra.mxu0 0.0
        %487 = vmatprep.subr.mxu0 0.0
        %488 = vmatpush1.msra.mxu0 0.0
        %489 = vmatprep.subr.mxu0 0.0
        %490 = vmatpush1.msra.mxu0 0.0
        %491 = vmatprep.subr.mxu0 0.0
        %492 = vmatpush1.msra.mxu0 0.0
        %493 = vmatprep.subr.mxu0 0.0
        %494 = vmatpush1.msra.mxu0 0.0
        %495 = vmatprep.subr.mxu0 0.0
        %496 = vmatpush1.msra.mxu0 0.0
        %497 = vmatprep.subr.mxu0 0.0
        %498 = vmatpush1.msra.mxu0 0.0
        %499 = vmatprep.subr.mxu0 0.0
        %500 = vmatpush1.msra.mxu0 0.0
        %501 = vmatprep.subr.mxu0 0.0
        %502 = vmatpush1.msra.mxu0 0.0
        %503 = vmatprep.subr.mxu0 0.0
        %504 = vmatpush1.msra.mxu0 0.0
        %505 = vmatprep.mubr.f32.mxu0 0.0
        %506 = vmatmul.mubr.f32.gmra.mrb[0].mxu0 %v292
        %v507 = vpop.f32.mrb[0].mxu0
        %v508 = vadd.f32 0.0, %v507
        %v509 = vpop.f32.mrb[0].mxu0
        %510 = vdwg.mxu0
        %v511 = vadd.f32 %v440, %v508
        %512 = vst.msk [vmem:[%s241] sm:$0xff] %vm365, %v511
        %s513 = sand.u32 %s98, 1
        %s514 = scalar_lea.sflag [#allocation3], %s513
        %s515 = sand.u32 %s98, 1
        %s516 = smul.addr %s515, 8
        %s517 = scalar_lea.vmem [#allocation2], %s516
        %s518 = sand.u32 %s22, 1
        %s519 = scalar_lea.sflag [#allocation5], %s518
        %s520 = sand.u32 %s124, 1
        %s521 = smul.addr %s520, 8
        %s522 = scalar_lea.vmem [#allocation4], %s521
        %s523 = sand.u32 %s22, 1
        %s524 = scalar_lea.sflag [#allocation5], %s523
        %s525 = sand.u32 %s150, 1
        %s526 = smul.addr %s525, 8
        %s527 = scalar_lea.vmem [#allocation6], %s526
        // Predicated region
        $region33: #{tpu_custom_call.1} parent=27 // pred_check
          %p528 = pneg %p108
        $region34: #{tpu_custom_call.1} parent=27 // pred_check_branch
          %530 = sbr.rel (%p528) target = $region36
        $region35: #{tpu_custom_call.1} parent=27 // pred_region
          %s532 = ssub.s32 128, 128
          %533 = vsyncadd %s514, %s532
          %s534 = smul.addr %s26, 128
          %s535 = scalar_lea.hbm %s2, %s534
          %s537 = sshll.u32 %s517, 4
          %s538 = int_to_ptr.vmem [resolvable:$true] %s537
          %540 = dma.vmem_to_hbm [thread:$0]  %s538, 128, %s535, %s514
        $region36: #{tpu_custom_call.1} parent=27 // pred_fallthru
          _
        // Predicated region
        $region37: #{tpu_custom_call.1} parent=27 // pred_check
          %p541 = pneg %p134
        $region38: #{tpu_custom_call.1} parent=27 // pred_check_branch
          %543 = sbr.rel (%p541) target = $region40
        $region39: #{tpu_custom_call.1} parent=27 // pred_region
          %s545 = ssub.s32 128, 128
          %546 = vsyncadd %s519, %s545
          %s547 = smul.addr %s26, 128
          %s548 = scalar_lea.hbm %s3, %s547
          %s550 = sshll.u32 %s522, 4
          %s551 = int_to_ptr.vmem [resolvable:$true] %s550
          %553 = dma.vmem_to_hbm [thread:$0]  %s551, 128, %s548, %s519
        $region40: #{tpu_custom_call.1} parent=27 // pred_fallthru
          _
        // Predicated region
        $region41: #{tpu_custom_call.1} parent=27 // pred_check
          %p554 = pneg %p160
        $region42: #{tpu_custom_call.1} parent=27 // pred_check_branch
          %556 = sbr.rel (%p554) target = $region44
        $region43: #{tpu_custom_call.1} parent=27 // pred_region
          %s558 = ssub.s32 128, 128
          %559 = vsyncadd %s524, %s558
          %s560 = smul.addr %s26, 128
          %s561 = scalar_lea.hbm %s4, %s560
          %s563 = sshll.u32 %s527, 4
          %s564 = int_to_ptr.vmem [resolvable:$true] %s563
          %566 = dma.vmem_to_hbm [thread:$0]  %s564, 128, %s561, %s524
        $region44: #{tpu_custom_call.1} parent=27 // pred_fallthru
          _
      $region28: #{tpu_custom_call.1} parent=5 // pred_fallthru
        _
      %p567 = scmp.le.s32.totalorder 2, %s17
      // Predicated region
      $region45: #{tpu_custom_call.1} parent=5 // pred_check
        %p568 = pneg %p567
      $region46: #{tpu_custom_call.1} parent=5 // pred_check_branch
        %570 = sbr.rel (%p568) target = $region48
      $region47: #{tpu_custom_call.1} parent=5 // pred_region
        %s571 = ssub.s32 %s17, 2
        // Predicated region
        $region49: #{tpu_custom_call.1} parent=47 // pred_check
          %p572 = pneg %p114
        $region50: #{tpu_custom_call.1} parent=47 // pred_check_branch
          %574 = sbr.rel (%p572) target = $region52
        $region51: #{tpu_custom_call.1} parent=47 // pred_region
          %s575 = sand.u32 %s99, 1
          %s576 = scalar_lea.sflag [#allocation3], %s575
          %s577 = sand.u32 %s99, 1
          %s578 = smul.addr %s577, 8
          %s579 = scalar_lea.vmem [#allocation2], %s578
          %580 = dma.done %s576, 128
        $region52: #{tpu_custom_call.1} parent=47 // pred_fallthru
          _
        // Predicated region
        $region53: #{tpu_custom_call.1} parent=47 // pred_check
          %p581 = pneg %p140
        $region54: #{tpu_custom_call.1} parent=47 // pred_check_branch
          %583 = sbr.rel (%p581) target = $region56
        $region55: #{tpu_custom_call.1} parent=47 // pred_region
          %s584 = sand.u32 %s23, 1
          %s585 = scalar_lea.sflag [#allocation5], %s584
          %s586 = sand.u32 %s125, 1
          %s587 = smul.addr %s586, 8
          %s588 = scalar_lea.vmem [#allocation4], %s587
          %589 = dma.done %s585, 128
        $region56: #{tpu_custom_call.1} parent=47 // pred_fallthru
          _
        // Predicated region
        $region57: #{tpu_custom_call.1} parent=47 // pred_check
          %p590 = pneg %p166
        $region58: #{tpu_custom_call.1} parent=47 // pred_check_branch
          %592 = sbr.rel (%p590) target = $region60
        $region59: #{tpu_custom_call.1} parent=47 // pred_region
          %s593 = sand.u32 %s23, 1
          %s594 = scalar_lea.sflag [#allocation5], %s593
          %s595 = sand.u32 %s151, 1
          %s596 = smul.addr %s595, 8
          %s597 = scalar_lea.vmem [#allocation6], %s596
          %598 = dma.done %s594, 128
        $region60: #{tpu_custom_call.1} parent=47 // pred_fallthru
          _
      $region48: #{tpu_custom_call.1} parent=5 // pred_fallthru
        _
    $region6: #{tpu_custom_call.1} parent=1 // loop_footer
      %s21 = sadd.s32 1, %s17
    $region7: #{tpu_custom_call.1} parent=1 // loop_footer_branch
      %16 = sbr.rel target = $region3
    $region8: #{tpu_custom_call.1} parent=1 // loop_exit
      _
    %599 = vsyncpa [#allocation3], 1
    %s600 = scalar_lea.sflag [#allocation3], 1
    %601 = vsyncpa %s600, 1
    %602 = vsyncpa [#allocation5], 1
    %s603 = scalar_lea.sflag [#allocation5], 1
    %604 = vsyncpa %s603, 1

</llo_original>
